<compile_context>
chip_gen: v5e
topology: v5e:2x2
jax: 0.10.0
libtpu: 0.0.40
codegen_flags: <defaults>
</compile_context>

<pallas_src>
import functools

import jax
import jax.numpy as jnp
from jax.experimental import pallas as pl
from jax.experimental.pallas import tpu as pltpu

LANE = 128


def _exist_loss_kernel(*refs, reweight, rows, need_row_mask):
    if reweight:
        pred_ref, plg_ref, mask_ref, out_ref, acc_ref, cnt_ref = refs
    else:
        pred_ref, mask_ref, out_ref, acc_ref, cnt_ref = refs
        plg_ref = None

    t = pl.program_id(1)
    t_steps = pl.num_programs(1)
    br = pred_ref.shape[0]

    @pl.when(t == 0)
    def _init():
        acc_ref[...] = jnp.zeros_like(acc_ref)
        cnt_ref[...] = jnp.zeros_like(cnt_ref)

    pred = pred_ref[...].astype(jnp.float32)           # (br, LANE)
    m = mask_ref[...]                                  # bool  (br, LANE)
    if m.dtype != jnp.bool_:                           # (kernel stays generic)
        m = m != 0

    if reweight:
        # exp(-pred / exp(pl)) == exp(-pred * exp(-pl)); both transcendentals
        # stay on the EUP and the multi-op f32 divide is avoided.
        val = jnp.exp(-pred * jnp.exp(-plg_ref[...].astype(jnp.float32)))
    else:
        val = jnp.exp(-pred)

    if need_row_mask:
        # Only the ragged last block / a clamped overhang step needs masking.
        # Cheap form: local row index vs scalar "rows remaining" (<= 0 on a
        # clamped overhang step, which therefore contributes nothing).
        rb = pl.program_id(0) * t_steps + t            # un-clamped block idx
        remaining = rows - rb * br
        row_in_block = jax.lax.broadcasted_iota(jnp.int32, (br, LANE), 0)
        m = jnp.logical_and(m, row_in_block < remaining)

    contrib = jnp.where(m, val, jnp.float32(0))
    cnt = m.astype(jnp.float32)

    # In-register partial reduce of consecutive 8-row groups into one (8,128)
    # vreg accumulator: VALU adds only, no full-block scratch RMW, no XLU.
    g = br // 8
    r = br - g * 8
    if g > 0:
        acc_ref[...] += contrib[: g * 8].reshape(g, 8, LANE).sum(axis=0)
        cnt_ref[...] += cnt[: g * 8].reshape(g, 8, LANE).sum(axis=0)
    if r > 0:  # br not a multiple of 8 (only possible for a full-extent block)
        acc_ref[0:r, :] += contrib[g * 8:, :]
        cnt_ref[0:r, :] += cnt[g * 8:, :]

    @pl.when(t == t_steps - 1)
    def _fin():
        out_ref[0, 0] = acc_ref[...]
        out_ref[0, 1] = cnt_ref[...]


def _tpu_flavor():
    """Best-effort (has_two_tensorcores, small_vmem) from the device kind."""
    kind = ""
    try:
        kind = jax.devices()[0].device_kind.lower()
    except Exception:
        pass
    two_cores = any(s in kind for s in ("v4", "v5p", "v7"))   # megacore chips
    small_vmem = "v7" in kind                                 # 64 MiB physical
    return two_cores, small_vmem


def exist_loss(pred_grad, pl_grad, pseudo_edge_area, *,
               reweight_target=True, block_rows=8192, num_cores=None):
    """Pallas TPU implementation of ExistLoss.forward. Returns a scalar f32.

    An empty pseudo_edge_area yields 0/0 = NaN, matching torch .mean() over an
    empty selection.
    """
    reweight = bool(reweight_target)
    f32 = jnp.float32

    pred = jnp.asarray(pred_grad).reshape(-1)
    if not jnp.issubdtype(pred.dtype, jnp.floating):
        pred = pred.astype(f32)
    mask = jnp.asarray(pseudo_edge_area).reshape(-1)
    if mask.dtype != jnp.bool_:
        mask = mask != 0
    if reweight:
        plg = jnp.asarray(pl_grad).reshape(-1)
        if not jnp.issubdtype(plg.dtype, jnp.floating):
            plg = plg.astype(f32)
    else:
        plg = None

    n = pred.shape[0]
    rows = n // LANE
    n_bulk = rows * LANE
    tail = n - n_bulk

    num = jnp.zeros((), f32)
    den = jnp.zeros((), f32)

    if rows > 0:
        two_cores, small_vmem = _tpu_flavor()

        if tail:
            # TODO(synk): a 128-misaligned flat size forces a prefix-slice copy
            # of the bulk; keep flattened sizes 128-aligned upstream to avoid it.
            pred_b, mask_b = pred[:n_bulk], mask[:n_bulk]
            plg_b = plg[:n_bulk] if reweight else None
        else:
            pred_b, mask_b, plg_b = pred, mask, plg   # metadata-only reshape

        pred2 = pred_b.reshape(rows, LANE)
        mask2 = mask_b.reshape(rows, LANE)
        plg2 = plg_b.reshape(rows, LANE) if reweight else None

        # HBM bytes streamed per row: pred + optional pl_grad + 1-byte mask.
        row_bytes = LANE * (pred2.dtype.itemsize + 1
                            + (plg2.dtype.itemsize if reweight else 0))

        # Per-generation VMEM budget for the double-buffered input streams.
        buf_budget = (20 << 20) if small_vmem else (40 << 20)
        br = min(int(block_rows), rows, max(32, buf_budget // (2 * row_bytes)))
        if br < rows:
            br = max(32, (br // 32) * 32)   # satisfies (8/16/32, 128) tiling

        nblk = -(-rows // br)
        if num_cores is None:
            ncores = 2 if (two_cores and nblk >= 2) else 1
        else:
            ncores = max(1, min(int(num_cores), nblk))
        t_steps = -(-nblk // ncores)
        need_row_mask = (rows % br != 0) or (ncores * t_steps != nblk)

        if ncores * t_steps == nblk:
            def in_idx(p, t, _ts=t_steps):
                return (p * _ts + t, 0)
        else:
            def in_idx(p, t, _ts=t_steps, _nb=nblk):
                # overhang step: clamp to a valid block; row mask zeroes it.
                return (jnp.minimum(p * _ts + t, _nb - 1), 0)

        in_specs = [pl.BlockSpec((br, LANE), in_idx)]
        args = [pred2]
        if reweight:
            in_specs.append(pl.BlockSpec((br, LANE), in_idx))
            args.append(plg2)
        in_specs.append(pl.BlockSpec((br, LANE), in_idx))
        args.append(mask2)

        # Scoped-VMEM limit: double-buffered inputs + headroom for the
        # compiler's full-block elementwise temporaries; cap below physical
        # VMEM (64 MiB on v7x, 128 MiB on v5e/v6e).
        needed = 2 * br * row_bytes + 6 * br * LANE * 4 + (2 << 20)
        vmem_limit = max(32 << 20,
                         min(needed, (56 << 20) if small_vmem else (110 << 20)))

        kernel = functools.partial(_exist_loss_kernel, reweight=reweight,
                                   rows=rows, need_row_mask=need_row_mask)

        partials = pl.pallas_call(
            kernel,
            out_shape=jax.ShapeDtypeStruct((ncores, 2, 8, LANE), f32),
            grid_spec=pltpu.PrefetchScalarGridSpec(
                num_scalar_prefetch=0,
                grid=(ncores, t_steps),
                in_specs=in_specs,
                out_specs=pl.BlockSpec((1, 2, 8, LANE),
                                       lambda p, t: (p, 0, 0, 0)),
                scratch_shapes=[pltpu.VMEM((8, LANE), f32),
                                pltpu.VMEM((8, LANE), f32)],
            ),
            compiler_params=pltpu.CompilerParams(
                dimension_semantics=("parallel", "arbitrary"),
                vmem_limit_bytes=int(vmem_limit)),
        )(*args)

        num = num + jnp.sum(partials[:, 0])
        den = den + jnp.sum(partials[:, 1])

    if tail:  # ragged (<128 elem) tail: negligible work, done in plain JAX
        pred_t = pred[n_bulk:].astype(f32)
        m_t = mask[n_bulk:].astype(f32)
        if reweight:
            val_t = jnp.exp(-pred_t * jnp.exp(-plg[n_bulk:].astype(f32)))
        else:
            val_t = jnp.exp(-pred_t)
        num = num + jnp.sum(val_t * m_t)
        den = den + jnp.sum(m_t)

    return num / den


def exist_loss_ref(pred_grad, pl_grad, pseudo_edge_area, *, reweight_target=True):
    """Pure-JAX reference (masked-mean form, original division formula)."""
    m = pseudo_edge_area.astype(jnp.float32)
    p = pred_grad.astype(jnp.float32)
    if reweight_target:
        val = jnp.exp(-p / jnp.exp(pl_grad.astype(jnp.float32)))
    else:
        val = jnp.exp(-p)
    return jnp.sum(val * m) / jnp.sum(m)


if __name__ == "__main__":
    root = jax.random.PRNGKey(0)

    def run_case(key, shape, reweight_target, *, dtype=jnp.float32,
                 block_rows=8192, num_cores=None, rtol=1e-5, atol=1e-6):
        k1, k2, k3 = jax.random.split(key, 3)
        # Pixel-wise gradient magnitudes (non-negative) + boolean edge mask.
        pred_grad = jax.random.uniform(k1, shape, dtype=jnp.float32).astype(dtype)
        pl_grad = jax.random.uniform(k2, shape, dtype=jnp.float32).astype(dtype)
        pseudo_edge_area = jax.random.uniform(k3, shape) < 0.5

        loss = exist_loss(pred_grad, pl_grad, pseudo_edge_area,
                          reweight_target=reweight_target,
                          block_rows=block_rows, num_cores=num_cores)
        loss = jax.block_until_ready(loss)

        ref = exist_loss_ref(pred_grad, pl_grad, pseudo_edge_area,
                             reweight_target=reweight_target)
        assert jnp.allclose(loss, ref, rtol=rtol, atol=atol), (
            shape, reweight_target, dtype, loss, ref)

    keys = jax.random.split(root, 5)
    # Main case: small NCHW, single block, reweighted target.
    run_case(keys[0], (2, 4, 16, 16), True)
    # No-reweight path: pl_grad stream is never DMA'd into the kernel.
    run_case(keys[1], (2, 4, 16, 16), False)
    # Multi-block + ragged last block + forced 2-way split (overhang + row mask).
    run_case(keys[2], (2, 4, 64, 100), True, block_rows=96, num_cores=2)
    # n % 128 != 0: bulk in-kernel + tiny JAX tail.
    run_case(keys[3], (2, 3, 16, 11), True)
    # Native bf16 streams (cast to f32 in-kernel), no wrapper upcast pass.
    run_case(keys[4], (2, 4, 16, 16), True, dtype=jnp.bfloat16, rtol=1e-4)

    print("KERNEL_OK")
</pallas_src>

<mosaic_0001>
module attributes {stable_mosaic.version = 11 : i64} {
  func.func @_exist_loss_kernel(%arg0: i32, %arg1: i32, %arg2: memref<16x128xf32, #tpu.memory_space<vmem>>, %arg3: memref<16x128xf32, #tpu.memory_space<vmem>>, %arg4: memref<16x128xi32, #tpu.memory_space<vmem>>, %arg5: memref<1x2x8x128xf32, #tpu.memory_space<vmem>>, %arg6: memref<8x128xf32, #tpu.memory_space<vmem>>, %arg7: memref<8x128xf32, #tpu.memory_space<vmem>>) attributes {dimension_semantics = [#tpu.dimension_semantics<parallel>, #tpu.dimension_semantics<arbitrary>], iteration_bounds = array<i64: 1, 1>, scalar_prefetch = 0 : i64, scratch_operands = 2 : i64, tpu.core_type = #tpu.core_type<tc>, window_params = [{transform_indices = @transform_0, window_bounds = array<i64: 16, 128>}, {transform_indices = @transform_1, window_bounds = array<i64: 16, 128>}, {transform_indices = @transform_2, window_bounds = array<i64: 16, 128>}, {transform_indices = @transform_3, window_bounds = array<i64: 1, 2, 8, 128>}]} {
    %c0_i32 = arith.constant 0 : i32
    %0 = arith.cmpi eq, %arg1, %c0_i32 : i32
    %1 = arith.extui %0 : i1 to i32
    %c0_i32_0 = arith.constant 0 : i32
    %2 = arith.cmpi ne, %1, %c0_i32_0 : i32
    scf.if %2 {
      %cst_21 = arith.constant 0.000000e+00 : f32
      %31 = vector.broadcast %cst_21 : f32 to vector<8x128xf32>
      %c0_22 = arith.constant 0 : index
      %c0_23 = arith.constant 0 : index
      %32 = vector.load %arg6[%c0_22, %c0_23] : memref<8x128xf32, #tpu.memory_space<vmem>>, vector<8x128xf32>
      tpu.vector_store %arg6[%c0_22, %c0_23], %31 {strides = array<i32>} : memref<8x128xf32, #tpu.memory_space<vmem>>, vector<8x128xf32>,
      %cst_24 = arith.constant 0.000000e+00 : f32
      %33 = vector.broadcast %cst_24 : f32 to vector<8x128xf32>
      %c0_25 = arith.constant 0 : index
      %c0_26 = arith.constant 0 : index
      %34 = vector.load %arg7[%c0_25, %c0_26] : memref<8x128xf32, #tpu.memory_space<vmem>>, vector<8x128xf32>
      tpu.vector_store %arg7[%c0_25, %c0_26], %33 {strides = array<i32>} : memref<8x128xf32, #tpu.memory_space<vmem>>, vector<8x128xf32>,
    } else {
    }
    %c0 = arith.constant 0 : index
    %c0_1 = arith.constant 0 : index
    %3 = vector.load %arg2[%c0, %c0_1] : memref<16x128xf32, #tpu.memory_space<vmem>>, vector<16x128xf32>
    %c0_2 = arith.constant 0 : index
    %c0_3 = arith.constant 0 : index
    %4 = vector.load %arg4[%c0_2, %c0_3] : memref<16x128xi32, #tpu.memory_space<vmem>>, vector<16x128xi32>
    %cst = arith.constant dense<0> : vector<16x128xi32>
    %5 = arith.cmpi ne, %4, %cst : vector<16x128xi32>
    %cst_4 = arith.constant 0.000000e+00 : f32
    %6 = vector.broadcast %cst_4 : f32 to vector<16x128xf32>
    %7 = arith.subf %6, %3 : vector<16x128xf32>
    %c0_5 = arith.constant 0 : index
    %c0_6 = arith.constant 0 : index
    %8 = vector.load %arg3[%c0_5, %c0_6] : memref<16x128xf32, #tpu.memory_space<vmem>>, vector<16x128xf32>
    %cst_7 = arith.constant 0.000000e+00 : f32
    %9 = vector.broadcast %cst_7 : f32 to vector<16x128xf32>
    %10 = arith.subf %9, %8 : vector<16x128xf32>
    %11 = math.exp %10 : vector<16x128xf32>
    %12 = arith.mulf %7, %11 : vector<16x128xf32>
    %13 = math.exp %12 : vector<16x128xf32>
    %cst_8 = arith.constant 0.000000e+00 : f32
    %14 = vector.broadcast %cst_8 : f32 to vector<16x128xf32>
    %15 = arith.select %5, %13, %14 : vector<16x128xi1>, vector<16x128xf32>
    %16 = arith.extui %5 : vector<16x128xi1> to vector<16x128xi32>
    %17 = arith.sitofp %16 : vector<16x128xi32> to vector<16x128xf32>
    %c0_9 = arith.constant 0 : index
    %c0_10 = arith.constant 0 : index
    %18 = vector.load %arg6[%c0_9, %c0_10] : memref<8x128xf32, #tpu.memory_space<vmem>>, vector<8x128xf32>
    %19 = vector.shape_cast %15 : vector<16x128xf32> to vector<2x8x128xf32>
    %cst_11 = arith.constant dense<0.000000e+00> : vector<8x128xf32>
    %20 = vector.multi_reduction <add>, %19, %cst_11 [0] : vector<2x8x128xf32> to vector<8x128xf32>
    %21 = arith.addf %18, %20 : vector<8x128xf32>
    %c0_12 = arith.constant 0 : index
    %c0_13 = arith.constant 0 : index
    %22 = vector.load %arg6[%c0_12, %c0_13] : memref<8x128xf32, #tpu.memory_space<vmem>>, vector<8x128xf32>
    tpu.vector_store %arg6[%c0_12, %c0_13], %21 {strides = array<i32>} : memref<8x128xf32, #tpu.memory_space<vmem>>, vector<8x128xf32>,
    %c0_14 = arith.constant 0 : index
    %c0_15 = arith.constant 0 : index
    %23 = vector.load %arg7[%c0_14, %c0_15] : memref<8x128xf32, #tpu.memory_space<vmem>>, vector<8x128xf32>
    %24 = vector.shape_cast %17 : vector<16x128xf32> to vector<2x8x128xf32>
    %cst_16 = arith.constant dense<0.000000e+00> : vector<8x128xf32>
    %25 = vector.multi_reduction <add>, %24, %cst_16 [0] : vector<2x8x128xf32> to vector<8x128xf32>
    %26 = arith.addf %23, %25 : vector<8x128xf32>
    %c0_17 = arith.constant 0 : index
    %c0_18 = arith.constant 0 : index
    %27 = vector.load %arg7[%c0_17, %c0_18] : memref<8x128xf32, #tpu.memory_space<vmem>>, vector<8x128xf32>
    tpu.vector_store %arg7[%c0_17, %c0_18], %26 {strides = array<i32>} : memref<8x128xf32, #tpu.memory_space<vmem>>, vector<8x128xf32>,
    %c0_i32_19 = arith.constant 0 : i32
    %28 = arith.cmpi eq, %arg1, %c0_i32_19 : i32
    %29 = arith.extui %28 : i1 to i32
    %c0_i32_20 = arith.constant 0 : i32
    %30 = arith.cmpi ne, %29, %c0_i32_20 : i32
    scf.if %30 {
      %c0_21 = arith.constant 0 : index
      %c0_22 = arith.constant 0 : index
      %31 = vector.load %arg6[%c0_21, %c0_22] : memref<8x128xf32, #tpu.memory_space<vmem>>, vector<8x128xf32>
      %c0_23 = arith.constant 0 : index
      %c0_24 = arith.constant 0 : index
      %c0_25 = arith.constant 0 : index
      %c0_26 = arith.constant 0 : index
      %32 = vector.load %arg5[%c0_23, %c0_24, %c0_25, %c0_26] : memref<1x2x8x128xf32, #tpu.memory_space<vmem>>, vector<1x1x8x128xf32>
      %33 = vector.shape_cast %32 : vector<1x1x8x128xf32> to vector<8x128xf32>
      %34 = vector.shape_cast %31 : vector<8x128xf32> to vector<1x1x8x128xf32>
      tpu.vector_store %arg5[%c0_23, %c0_24, %c0_25, %c0_26], %34 {strides = array<i32>} : memref<1x2x8x128xf32, #tpu.memory_space<vmem>>, vector<1x1x8x128xf32>,
      %c0_27 = arith.constant 0 : index
      %c0_28 = arith.constant 0 : index
      %35 = vector.load %arg7[%c0_27, %c0_28] : memref<8x128xf32, #tpu.memory_space<vmem>>, vector<8x128xf32>
      %c0_29 = arith.constant 0 : index
      %c1 = arith.constant 1 : index
      %c0_30 = arith.constant 0 : index
      %c0_31 = arith.constant 0 : index
      %36 = vector.load %arg5[%c0_29, %c1, %c0_30, %c0_31] : memref<1x2x8x128xf32, #tpu.memory_space<vmem>>, vector<1x1x8x128xf32>
      %37 = vector.shape_cast %36 : vector<1x1x8x128xf32> to vector<8x128xf32>
      %38 = vector.shape_cast %35 : vector<8x128xf32> to vector<1x1x8x128xf32>
      tpu.vector_store %arg5[%c0_29, %c1, %c0_30, %c0_31], %38 {strides = array<i32>} : memref<1x2x8x128xf32, #tpu.memory_space<vmem>>, vector<1x1x8x128xf32>,
    } else {
    }
    return
  }
  func.func @transform_0(%arg0: i32, %arg1: i32) -> (i32, i32) {
    %c1_i32 = arith.constant 1 : i32
    %0 = arith.muli %arg0, %c1_i32 : i32
    %1 = arith.addi %0, %arg1 : i32
    %c0_i32 = arith.constant 0 : i32
    %c0_i32_0 = arith.constant 0 : i32
    return %1, %c0_i32 : i32, i32
  }
  func.func @transform_1(%arg0: i32, %arg1: i32) -> (i32, i32) {
    %c1_i32 = arith.constant 1 : i32
    %0 = arith.muli %arg0, %c1_i32 : i32
    %1 = arith.addi %0, %arg1 : i32
    %c0_i32 = arith.constant 0 : i32
    %c0_i32_0 = arith.constant 0 : i32
    return %1, %c0_i32 : i32, i32
  }
  func.func @transform_2(%arg0: i32, %arg1: i32) -> (i32, i32) {
    %c1_i32 = arith.constant 1 : i32
    %0 = arith.muli %arg0, %c1_i32 : i32
    %1 = arith.addi %0, %arg1 : i32
    %c0_i32 = arith.constant 0 : i32
    %c0_i32_0 = arith.constant 0 : i32
    return %1, %c0_i32 : i32, i32
  }
  func.func @transform_3(%arg0: i32, %arg1: i32) -> (i32, i32, i32, i32) {
    %c0_i32 = arith.constant 0 : i32
    %c0_i32_0 = arith.constant 0 : i32
    %c0_i32_1 = arith.constant 0 : i32
    %c0_i32_2 = arith.constant 0 : i32
    return %arg0, %c0_i32, %c0_i32_0, %c0_i32_1 : i32, i32, i32, i32
  }
}

</mosaic_0001>

<llo_original>
// kernel: tpu_custom_call.1
$region0: #{tpu_custom_call.1}
  #allocation0 [shape = 'u32[]', space=smem, size = 0x4, offset = 0x4, fixed_abs, tag = 'smem constant byte address 0x4 - core index']
  #allocation1 [shape = 'u32[72,128]{1,0:T(1,128)}', space=vmem, size = 0x9000, scoped, tag = 'internal scratch']
  #allocation2 [shape = 'f32[8,128]{1,0:T(8,128)}', space=vmem, size = 0x1000, scoped, tag = 'scratch operand']
  #allocation3 [shape = 'f32[8,128]{1,0:T(8,128)}', space=vmem, size = 0x1000, scoped, tag = 'scratch operand']
  %s0 = inlined_call_operand.vmem [shape: f32[16,128], index: 0, kind: input, shape index: {}]
  %s1 = inlined_call_operand.hbm [shape: f32[16,128], index: 1, kind: input, shape index: {}]
  %s2 = inlined_call_operand.vmem [shape: s32[16,128], index: 2, kind: input, shape index: {}]
  %s3 = inlined_call_operand.hbm [shape: f32[1,2,8,128], index: 3, kind: output, shape index: {}]
  %s4 = sld [smem:[#allocation0]]
  $region34: #{tpu_custom_call.1} parent=0
    _
  %s6 = ssub.s32 1, %s4
  %s7 = scalar_select 0, %s6, %s4
  $region1: #{tpu_custom_call.1} parent=0
    #allocation4 [shape = 'u8[8192]{0}', space=vmem, size = 0x2000, scoped, tag = 'input window, operand 1, single buffered']
    #allocation5 [shape = 's32[1]{0}', space=sflag, size = 0x4, scoped, tag = 'scoped memory for tpu_custom_call.1']
    #allocation6 [shape = 's32[1]{0}', space=sflag, size = 0x4, scoped, tag = 'scoped memory for tpu_custom_call.1']
    #allocation7 [shape = 'u8[8192]{0}', space=vmem, size = 0x2000, scoped, tag = 'output window, operand 0, single buffered']
    %8 = vsyncpa [#allocation5], 0
    %9 = vsyncpa [#allocation6], 0
    // Predicated region
    $region2: #{tpu_custom_call.1} parent=1 // pred_check
      _
    $region3: #{tpu_custom_call.1} parent=1 // pred_check_branch
      %11 = sbr.rel (0) target = $region5
    $region4: #{tpu_custom_call.1} parent=1 // pred_region
      %s12 = sadd.s32 0, 0
      %s13 = smul.u32 2, %s12
      %p14 = scmp.lt.s32.totalorder %s13, 1
      %s15 = scalar_select %p14, %s13, 1
      %s16 = smul.addr %s15, 8
      %s17 = scalar_lea.vmem %s0, %s16
      %s18 = sadd.s32 0, 0
      %s19 = smul.u32 2, %s18
    $region5: #{tpu_custom_call.1} parent=1 // pred_fallthru
      _
    // Predicated region
    $region6: #{tpu_custom_call.1} parent=1 // pred_check
      _
    $region7: #{tpu_custom_call.1} parent=1 // pred_check_branch
      %21 = sbr.rel (0) target = $region9
    $region8: #{tpu_custom_call.1} parent=1 // pred_region
      %s22 = sadd.s32 0, 0
      %s23 = smul.u32 2, %s22
      %25 = vsyncadd [#allocation5], 0
      %s26 = smul.addr %s23, 8
      %s27 = scalar_lea.hbm %s1, %s26
      %s28 = sshll.u32 %s27, 4
      %s29 = int_to_ptr.hbm [resolvable:$true] %s28
      %s30 = sshll.u32 [#allocation4], 4
      %s31 = int_to_ptr.vmem [resolvable:$true] %s30
      %36 = dma.hbm_to_vmem [thread:$0]  %s29, 256, %s31, [#allocation5], 128, 128, 8
    $region9: #{tpu_custom_call.1} parent=1 // pred_fallthru
      _
    // Predicated region
    $region10: #{tpu_custom_call.1} parent=1 // pred_check
      _
    $region11: #{tpu_custom_call.1} parent=1 // pred_check_branch
      %38 = sbr.rel (0) target = $region13
    $region12: #{tpu_custom_call.1} parent=1 // pred_region
      %s39 = sadd.s32 0, 0
      %s40 = smul.u32 2, %s39
      %p41 = scmp.lt.s32.totalorder %s40, 1
      %s42 = scalar_select %p41, %s40, 1
      %s43 = smul.addr %s42, 8
      %s44 = scalar_lea.vmem %s2, %s43
      %s45 = sadd.s32 0, 0
      %s46 = smul.u32 2, %s45
    $region13: #{tpu_custom_call.1} parent=1 // pred_fallthru
      _
    // Predicated region
    $region14: #{tpu_custom_call.1} parent=1 // pred_check
      _
    $region15: #{tpu_custom_call.1} parent=1 // pred_check_branch
      %48 = sbr.rel (0) target = $region17
    $region16: #{tpu_custom_call.1} parent=1 // pred_region
      %50 = dma.done [#allocation5], 256
    $region17: #{tpu_custom_call.1} parent=1 // pred_fallthru
      _
    %s51 = sadd.s32 0, 0
    %s52 = smul.u32 2, %s51
    %p53 = scmp.lt.s32.totalorder %s52, 1
    %s54 = scalar_select %p53, %s52, 1
    %s55 = smul.addr %s54, 8
    %s56 = scalar_lea.vmem %s0, %s55
    %s57 = sadd.s32 0, 0
    %s58 = smul.u32 2, %s57
    %p59 = scmp.lt.s32.totalorder %s58, 1
    %s60 = scalar_select %p59, %s58, 1
    %s61 = smul.addr %s60, 8
    %s62 = scalar_lea.vmem %s2, %s61
    %s63 = sadd.s32 0, 0
    %s64 = smul.u32 2, %s63
    %p65 = scmp.lt.s32.totalorder %s64, 1
    %s66 = scalar_select %p65, %s64, 1
    %s67 = smul.addr %s66, 8
    %s68 = scalar_lea.vmem %s0, %s67
    %s69 = sadd.s32 0, 0
    %s70 = smul.u32 2, %s69
    %s71 = sadd.s32 0, 0
    %s72 = smul.u32 2, %s71
    %s73 = sadd.s32 0, 0
    %s74 = smul.u32 2, %s73
    %p75 = scmp.lt.s32.totalorder %s74, 1
    %s76 = scalar_select %p75, %s74, 1
    %s77 = smul.addr %s76, 8
    %s78 = scalar_lea.vmem %s2, %s77
    %s79 = sadd.s32 0, 0
    %s80 = smul.u32 2, %s79
    %p81 = scmp.eq.s32.totalorder 0, 0
    // Predicated region
    $region18: #{tpu_custom_call.1} parent=1 // pred_check
      %p82 = pneg %p81
    $region19: #{tpu_custom_call.1} parent=1 // pred_check_branch
      %84 = sbr.rel (%p82) target = $region21
    $region20: #{tpu_custom_call.1} parent=1 // pred_region
      %85 = vst [vmem:[#allocation2] sm:$0xff] 0.0
      %86 = vst [vmem:[#allocation3] sm:$0xff] 0.0
    $region21: #{tpu_custom_call.1} parent=1 // pred_fallthru
      _
    %v87 = vld [vmem:[%s68] sm:$0xff]
    %v88 = vld [vmem:[%s68 + $0x8] sm:$0xff]
    %v89 = vld [vmem:[%s78] sm:$0xff]
    %v90 = vld [vmem:[%s78 + $0x8] sm:$0xff]
    %vm91 = vcmp.ne.s32.totalorder %v89, 0
    %vm92 = vcmp.ne.s32.totalorder %v90, 0
    %v93 = vsub.f32 0.0, %v87
    %v94 = vsub.f32 0.0, %v88
    %v95 = vld [vmem:[#allocation4] sm:$0xff]
    %v96 = vld [vmem:[#allocation4 + $0x8] sm:$0xff]
    %v97 = vsub.f32 0.0, %v95
    %v98 = vsub.f32 0.0, %v96
    %v99 = vmul.f32 %v97, 1.442695
    %v100 = vpow.pop %v99
    %v101 = vmul.f32 %v98, 1.442695
    %v102 = vpow.pop %v101
    %v103 = vmul.f32 %v93, %v100
    %v104 = vmul.f32 %v94, %v102
    %v105 = vmul.f32 %v103, 1.442695
    %v106 = vpow.pop %v105
    %v107 = vmul.f32 %v104, 1.442695
    %v108 = vpow.pop %v107
    %v109 = vsel %vm91, %v106, 0.0
    %v110 = vsel %vm92, %v108, 0.0
    %v111 = vsel %vm91, 1, 0
    %v112 = vsel %vm92, 1, 0
    %v113 = vcvt.s32.f32 %v111
    %v114 = vcvt.s32.f32 %v112
    %v115 = vld [vmem:[#allocation2] sm:$0xff]
    %v116 = vadd.f32 %v109, %v110
    %v117 = vadd.f32 %v115, %v116
    %118 = vst [vmem:[#allocation2] sm:$0xff] %v117
    %v119 = vld [vmem:[#allocation3] sm:$0xff]
    %v120 = vadd.f32 %v113, %v114
    %v121 = vadd.f32 %v119, %v120
    %122 = vst [vmem:[#allocation3] sm:$0xff] %v121
    // Predicated region
    $region22: #{tpu_custom_call.1} parent=1 // pred_check
      %p123 = pneg %p81
    $region23: #{tpu_custom_call.1} parent=1 // pred_check_branch
      %125 = sbr.rel (%p123) target = $region25
    $region24: #{tpu_custom_call.1} parent=1 // pred_region
      %v126 = vld [vmem:[#allocation2] sm:$0xff]
      %127 = vst [vmem:[#allocation7] sm:$0xff] %v126
      %v128 = vld [vmem:[#allocation3] sm:$0xff]
      %s129 = scalar_lea.vmem [#allocation7], 8
      %130 = vst [vmem:[%s129] sm:$0xff] %v128
    $region25: #{tpu_custom_call.1} parent=1 // pred_fallthru
      _
    // Predicated region
    $region26: #{tpu_custom_call.1} parent=1 // pred_check
      _
    $region27: #{tpu_custom_call.1} parent=1 // pred_check_branch
      %132 = sbr.rel (0) target = $region29
    $region28: #{tpu_custom_call.1} parent=1 // pred_region
      %134 = vsyncadd [#allocation6], 0
      %s135 = sshll.u32 [#allocation7], 4
      %s136 = int_to_ptr.vmem [resolvable:$true] %s135
      %s137 = sshll.u32 %s3, 4
      %s138 = int_to_ptr.hbm [resolvable:$true] %s137
      %143 = dma.vmem_to_hbm [thread:$0]  %s136, 256, %s138, [#allocation6], 128, 128, 8
    $region29: #{tpu_custom_call.1} parent=1 // pred_fallthru
      _
    // Predicated region
    $region30: #{tpu_custom_call.1} parent=1 // pred_check
      _
    $region31: #{tpu_custom_call.1} parent=1 // pred_check_branch
      %145 = sbr.rel (0) target = $region33
    $region32: #{tpu_custom_call.1} parent=1 // pred_region
      %147 = dma.done [#allocation6], 256
    $region33: #{tpu_custom_call.1} parent=1 // pred_fallthru
      _
    %148 = vsyncpa [#allocation5], 1
    %149 = vsyncpa [#allocation6], 1

</llo_original>
